<compile_context>
chip_gen: v7x
topology: tpu7x:2x2x1
jax: 0.10.0
libtpu: 0.0.40
codegen_flags: <defaults>
</compile_context>

<pallas_src>
import numpy as np
import jax
import jax.numpy as jnp
from jax import lax
from jax.experimental import pallas as pl
from jax.experimental.pallas import tpu as pltpu

_CHUNK = 32     # tokens per grid step
_LANE = 128


def _round_up(x, m):
    return (x + m - 1) // m * m


def _make_kernel(chunk, batch):
    """Builds the kernel for a static (chunk, batch)."""

    def kernel(text_ref,                                     # SMEM: token ids (t_pad,)
               bag_ref, emb_ref, wfc_ref, bfc_ref, inv_ref,  # VMEM resident inputs
               out_ref,                                      # VMEM output (B, NC_PAD)
               acc_ref, gat_ref):                            # VMEM scratch
        c = pl.program_id(0)
        n_chunks = pl.num_programs(0)

        @pl.when(c == 0)
        def _():
            acc_ref[...] = jnp.zeros_like(acc_ref)

        base = c * chunk

        # 1) Gather: copy `chunk` embedding rows into the staging buffer.
        #    Dynamic sublane slice from the VMEM-resident table; padded tokens
        #    read row 0 (harmless -- they get a zero one-hot column below).
        def body(i, carry):
            idx = text_ref[base + i]
            gat_ref[pl.ds(i, 1), :] = emb_ref[pl.ds(idx, 1), :].astype(jnp.float32)
            return carry

        lax.fori_loop(0, chunk, body, 0, unroll=True)

        # 2) Scatter-add the whole chunk with ONE MXU matmul:
        #       acc[b, :] += sum_i [bag[i] == b] * gathered[i, :]
        bag_vec = bag_ref[pl.ds(c, 1), :]                              # (1, chunk) i32
        onehot = (bag_vec ==
                  lax.broadcasted_iota(jnp.int32, (batch, chunk), 0)
                  ).astype(jnp.float32)                                # (B, chunk)
        acc_ref[...] += jnp.dot(onehot, gat_ref[...],
                                preferred_element_type=jnp.float32)

        # 3) Finalize: mean-pool + fc (lane-dense padded num_class).
        @pl.when(c == n_chunks - 1)
        def _():
            # EmbeddingBag(mode='mean'); empty bags have inv_count == 0 -> zeros
            pooled = acc_ref[...] * inv_ref[...]                       # (B, D)
            logits = jnp.dot(pooled, wfc_ref[...],
                             preferred_element_type=jnp.float32) + bfc_ref[...]
            out_ref[...] = logits.astype(out_ref.dtype)

    return kernel


def text_classification_forward(text, offsets, emb_table, w_fc, b_fc, *,
                                chunk=_CHUNK):
    """text: int (T,), offsets: int (B,) sorted with offsets[0]==0,
    emb_table: (vocab, embed_dim), w_fc: (num_class, embed_dim) [PyTorch layout],
    b_fc: (num_class,)."""
    text = text.astype(jnp.int32)
    offsets = offsets.astype(jnp.int32)
    T = text.shape[0]
    B = offsets.shape[0]
    vocab, embed_dim = emb_table.shape
    num_class = w_fc.shape[0]

    if T == 0:
        # no tokens: every bag pools to zeros -> logits are just the bias
        return jnp.broadcast_to(b_fc.astype(jnp.float32)[None, :], (B, num_class))

    # ------- cheap host/XLA-side precompute --------------------------------
    nc_pad = _round_up(num_class, _LANE)                 # lane-dense fc / store
    wfc_t = jnp.zeros((embed_dim, nc_pad), jnp.float32)
    wfc_t = wfc_t.at[:, :num_class].set(jnp.transpose(w_fc).astype(jnp.float32))
    bias2 = jnp.zeros((1, nc_pad), jnp.float32)
    bias2 = bias2.at[:, :num_class].set(b_fc.astype(jnp.float32)[None, :])

    # bag id per token, per-bag inverse counts (mean pooling)
    bag_ids = (jnp.searchsorted(offsets, jnp.arange(T, dtype=jnp.int32),
                                side='right') - 1).astype(jnp.int32)
    counts = jnp.diff(jnp.concatenate([offsets, jnp.array([T], jnp.int32)]))
    counts = counts.astype(jnp.float32).reshape(B, 1)
    inv_counts = jnp.where(counts > 0, 1.0 / jnp.maximum(counts, 1.0), 0.0)

    # pad token stream to a chunk multiple; padded tokens get bag_id = -1
    t_pad = _round_up(T, chunk)
    n_chunks = t_pad // chunk
    text_p = jnp.zeros((t_pad,), jnp.int32).at[:T].set(text)
    bag_2d = (jnp.full((t_pad,), -1, jnp.int32).at[:T].set(bag_ids)
              .reshape(n_chunks, chunk))

    emb_f32 = emb_table.astype(jnp.float32)

    # VMEM budget: resident table (lane-padded, possibly double-buffered)
    table_vmem = 2 * vocab * max(embed_dim, _LANE) * 4
    vmem_limit = int(min(100 * 2**20, max(32 * 2**20, table_vmem + (8 << 20))))

    grid_spec = pltpu.PrefetchScalarGridSpec(
        num_scalar_prefetch=1,            # token ids -> SMEM (gather indices)
        grid=(n_chunks,),
        in_specs=[
            # resident bag-id table (one row per chunk, sliced in-kernel)
            pl.BlockSpec((n_chunks, chunk), lambda c, txt: (0, 0)),
            # resident embedding table (constant index_map -> DMA'd once)
            pl.BlockSpec((vocab, embed_dim), lambda c, txt: (0, 0)),
            # fc weight / bias / inverse counts: full resident blocks
            pl.BlockSpec((embed_dim, nc_pad), lambda c, txt: (0, 0)),
            pl.BlockSpec((1, nc_pad), lambda c, txt: (0, 0)),
            pl.BlockSpec((B, 1), lambda c, txt: (0, 0)),
        ],
        out_specs=pl.BlockSpec((B, nc_pad), lambda c, txt: (0, 0)),
        scratch_shapes=[pltpu.VMEM((B, embed_dim), jnp.float32),       # bag sums
                        pltpu.VMEM((chunk, embed_dim), jnp.float32)],  # gathered chunk
    )

    out_pad = pl.pallas_call(
        _make_kernel(chunk, B),
        out_shape=jax.ShapeDtypeStruct((B, nc_pad), jnp.float32),
        grid_spec=grid_spec,
        compiler_params=pltpu.CompilerParams(
            dimension_semantics=("arbitrary",),   # token-chunk axis is a reduction
            vmem_limit_bytes=vmem_limit),
    )(text_p, bag_2d, emb_f32, wfc_t, bias2, inv_counts)

    return out_pad[:, :num_class]


def _reference(text, offsets, emb_table, w_fc, b_fc):
    T = text.shape[0]
    B = offsets.shape[0]
    bag_ids = jnp.searchsorted(offsets, jnp.arange(T), side='right') - 1
    gathered = emb_table[text]                                   # (T, D)
    sums = jax.ops.segment_sum(gathered, bag_ids, num_segments=B)
    counts = jax.ops.segment_sum(jnp.ones((T, 1), jnp.float32), bag_ids,
                                 num_segments=B)
    pooled = jnp.where(counts > 0, sums / jnp.maximum(counts, 1.0), 0.0)
    return pooled @ w_fc.T + b_fc


if __name__ == "__main__":
    key = jax.random.PRNGKey(0)
    vocab_size, embed_dim, num_class = 64, 32, 4
    batch, seq = 2, 8   # total number of tokens across the batch = 8

    k1, k2, k3, k4 = jax.random.split(key, 4)
    emb_table = jax.random.normal(k1, (vocab_size, embed_dim), jnp.float32)
    w_fc = 0.1 * jax.random.normal(k2, (num_class, embed_dim), jnp.float32)
    b_fc = 0.1 * jax.random.normal(k3, (num_class,), jnp.float32)

    text = jax.random.randint(k4, (seq,), 0, vocab_size, dtype=jnp.int32)
    offsets = jnp.array([0, 5], dtype=jnp.int32)   # bag 0: tokens 0..4, bag 1: 5..7

    out = text_classification_forward(text, offsets, emb_table, w_fc, b_fc)
    out = jax.block_until_ready(out)

    ref = _reference(text, offsets, emb_table, w_fc, b_fc)
    assert out.shape == (batch, num_class)
    assert np.allclose(np.asarray(out), np.asarray(ref), rtol=1e-5, atol=1e-5)
    print("KERNEL_OK")
</pallas_src>

<mosaic_0001>
module attributes {stable_mosaic.version = 11 : i64} {
  func.func @kernel(%arg0: i32, %arg1: memref<32xi32, #tpu.memory_space<smem>>, %arg2: memref<1x32xi32, #tpu.memory_space<vmem>>, %arg3: memref<64x32xf32, #tpu.memory_space<vmem>>, %arg4: memref<32x128xf32, #tpu.memory_space<vmem>>, %arg5: memref<1x128xf32, #tpu.memory_space<vmem>>, %arg6: memref<2x1xf32, #tpu.memory_space<vmem>>, %arg7: memref<2x128xf32, #tpu.memory_space<vmem>>, %arg8: memref<2x32xf32, #tpu.memory_space<vmem>>, %arg9: memref<32x32xf32, #tpu.memory_space<vmem>>) attributes {dimension_semantics = [#tpu.dimension_semantics<arbitrary>], iteration_bounds = array<i64: 1>, scalar_prefetch = 1 : i64, scratch_operands = 2 : i64, tpu.core_type = #tpu.core_type<tc>, window_params = [{pipeline_mode = #tpu.pipeline_mode<synchronous>, transform_indices = @transform_0, window_bounds = array<i64: 1, 32>}, {pipeline_mode = #tpu.pipeline_mode<synchronous>, transform_indices = @transform_1, window_bounds = array<i64: 64, 32>}, {pipeline_mode = #tpu.pipeline_mode<synchronous>, transform_indices = @transform_2, window_bounds = array<i64: 32, 128>}, {pipeline_mode = #tpu.pipeline_mode<synchronous>, transform_indices = @transform_3, window_bounds = array<i64: 1, 128>}, {pipeline_mode = #tpu.pipeline_mode<synchronous>, transform_indices = @transform_4, window_bounds = array<i64: 2, 1>}, {pipeline_mode = #tpu.pipeline_mode<synchronous>, transform_indices = @transform_5, window_bounds = array<i64: 2, 128>}]} {
    %c0_i32 = arith.constant 0 : i32
    %0 = arith.cmpi eq, %arg0, %c0_i32 : i32
    %1 = arith.extui %0 : i1 to i32
    %c0_i32_0 = arith.constant 0 : i32
    %2 = arith.cmpi ne, %1, %c0_i32_0 : i32
    scf.if %2 {
      %cst_75 = arith.constant 0.000000e+00 : f32
      %243 = vector.broadcast %cst_75 : f32 to vector<2x32xf32>
      %c0_76 = arith.constant 0 : index
      %c0_77 = arith.constant 0 : index
      %244 = vector.load %arg8[%c0_76, %c0_77] : memref<2x32xf32, #tpu.memory_space<vmem>>, vector<2x32xf32>
      tpu.vector_store %arg8[%c0_76, %c0_77], %243 {strides = array<i32>} : memref<2x32xf32, #tpu.memory_space<vmem>>, vector<2x32xf32>,
    } else {
    }
    %c32_i32 = arith.constant 32 : i32
    %3 = arith.muli %arg0, %c32_i32 : i32
    %c0_i32_1 = arith.constant 0 : i32
    %4 = arith.addi %3, %c0_i32_1 : i32
    %5 = arith.index_cast %4 : i32 to index
    %6 = memref.load %arg1[%5] : memref<32xi32, #tpu.memory_space<smem>>
    %7 = arith.index_cast %6 : i32 to index
    %c0 = arith.constant 0 : index
    %8 = vector.load %arg3[%7, %c0] : memref<64x32xf32, #tpu.memory_space<vmem>>, vector<1x32xf32>
    %9 = arith.index_cast %c0_i32_1 : i32 to index
    %c0_2 = arith.constant 0 : index
    %10 = vector.load %arg9[%9, %c0_2] : memref<32x32xf32, #tpu.memory_space<vmem>>, vector<1x32xf32>
    tpu.vector_store %arg9[%9, %c0_2], %8 {strides = array<i32>} : memref<32x32xf32, #tpu.memory_space<vmem>>, vector<1x32xf32>,
    %c1_i32 = arith.constant 1 : i32
    %11 = arith.addi %3, %c1_i32 : i32
    %12 = arith.index_cast %11 : i32 to index
    %13 = memref.load %arg1[%12] : memref<32xi32, #tpu.memory_space<smem>>
    %14 = arith.index_cast %13 : i32 to index
    %c0_3 = arith.constant 0 : index
    %15 = vector.load %arg3[%14, %c0_3] : memref<64x32xf32, #tpu.memory_space<vmem>>, vector<1x32xf32>
    %16 = arith.index_cast %c1_i32 : i32 to index
    %c0_4 = arith.constant 0 : index
    %17 = vector.load %arg9[%16, %c0_4] : memref<32x32xf32, #tpu.memory_space<vmem>>, vector<1x32xf32>
    tpu.vector_store %arg9[%16, %c0_4], %15 {strides = array<i32>} : memref<32x32xf32, #tpu.memory_space<vmem>>, vector<1x32xf32>,
    %c2_i32 = arith.constant 2 : i32
    %18 = arith.addi %3, %c2_i32 : i32
    %19 = arith.index_cast %18 : i32 to index
    %20 = memref.load %arg1[%19] : memref<32xi32, #tpu.memory_space<smem>>
    %21 = arith.index_cast %20 : i32 to index
    %c0_5 = arith.constant 0 : index
    %22 = vector.load %arg3[%21, %c0_5] : memref<64x32xf32, #tpu.memory_space<vmem>>, vector<1x32xf32>
    %23 = arith.index_cast %c2_i32 : i32 to index
    %c0_6 = arith.constant 0 : index
    %24 = vector.load %arg9[%23, %c0_6] : memref<32x32xf32, #tpu.memory_space<vmem>>, vector<1x32xf32>
    tpu.vector_store %arg9[%23, %c0_6], %22 {strides = array<i32>} : memref<32x32xf32, #tpu.memory_space<vmem>>, vector<1x32xf32>,
    %c3_i32 = arith.constant 3 : i32
    %25 = arith.addi %3, %c3_i32 : i32
    %26 = arith.index_cast %25 : i32 to index
    %27 = memref.load %arg1[%26] : memref<32xi32, #tpu.memory_space<smem>>
    %28 = arith.index_cast %27 : i32 to index
    %c0_7 = arith.constant 0 : index
    %29 = vector.load %arg3[%28, %c0_7] : memref<64x32xf32, #tpu.memory_space<vmem>>, vector<1x32xf32>
    %30 = arith.index_cast %c3_i32 : i32 to index
    %c0_8 = arith.constant 0 : index
    %31 = vector.load %arg9[%30, %c0_8] : memref<32x32xf32, #tpu.memory_space<vmem>>, vector<1x32xf32>
    tpu.vector_store %arg9[%30, %c0_8], %29 {strides = array<i32>} : memref<32x32xf32, #tpu.memory_space<vmem>>, vector<1x32xf32>,
    %c4_i32 = arith.constant 4 : i32
    %32 = arith.addi %3, %c4_i32 : i32
    %33 = arith.index_cast %32 : i32 to index
    %34 = memref.load %arg1[%33] : memref<32xi32, #tpu.memory_space<smem>>
    %35 = arith.index_cast %34 : i32 to index
    %c0_9 = arith.constant 0 : index
    %36 = vector.load %arg3[%35, %c0_9] : memref<64x32xf32, #tpu.memory_space<vmem>>, vector<1x32xf32>
    %37 = arith.index_cast %c4_i32 : i32 to index
    %c0_10 = arith.constant 0 : index
    %38 = vector.load %arg9[%37, %c0_10] : memref<32x32xf32, #tpu.memory_space<vmem>>, vector<1x32xf32>
    tpu.vector_store %arg9[%37, %c0_10], %36 {strides = array<i32>} : memref<32x32xf32, #tpu.memory_space<vmem>>, vector<1x32xf32>,
    %c5_i32 = arith.constant 5 : i32
    %39 = arith.addi %3, %c5_i32 : i32
    %40 = arith.index_cast %39 : i32 to index
    %41 = memref.load %arg1[%40] : memref<32xi32, #tpu.memory_space<smem>>
    %42 = arith.index_cast %41 : i32 to index
    %c0_11 = arith.constant 0 : index
    %43 = vector.load %arg3[%42, %c0_11] : memref<64x32xf32, #tpu.memory_space<vmem>>, vector<1x32xf32>
    %44 = arith.index_cast %c5_i32 : i32 to index
    %c0_12 = arith.constant 0 : index
    %45 = vector.load %arg9[%44, %c0_12] : memref<32x32xf32, #tpu.memory_space<vmem>>, vector<1x32xf32>
    tpu.vector_store %arg9[%44, %c0_12], %43 {strides = array<i32>} : memref<32x32xf32, #tpu.memory_space<vmem>>, vector<1x32xf32>,
    %c6_i32 = arith.constant 6 : i32
    %46 = arith.addi %3, %c6_i32 : i32
    %47 = arith.index_cast %46 : i32 to index
    %48 = memref.load %arg1[%47] : memref<32xi32, #tpu.memory_space<smem>>
    %49 = arith.index_cast %48 : i32 to index
    %c0_13 = arith.constant 0 : index
    %50 = vector.load %arg3[%49, %c0_13] : memref<64x32xf32, #tpu.memory_space<vmem>>, vector<1x32xf32>
    %51 = arith.index_cast %c6_i32 : i32 to index
    %c0_14 = arith.constant 0 : index
    %52 = vector.load %arg9[%51, %c0_14] : memref<32x32xf32, #tpu.memory_space<vmem>>, vector<1x32xf32>
    tpu.vector_store %arg9[%51, %c0_14], %50 {strides = array<i32>} : memref<32x32xf32, #tpu.memory_space<vmem>>, vector<1x32xf32>,
    %c7_i32 = arith.constant 7 : i32
    %53 = arith.addi %3, %c7_i32 : i32
    %54 = arith.index_cast %53 : i32 to index
    %55 = memref.load %arg1[%54] : memref<32xi32, #tpu.memory_space<smem>>
    %56 = arith.index_cast %55 : i32 to index
    %c0_15 = arith.constant 0 : index
    %57 = vector.load %arg3[%56, %c0_15] : memref<64x32xf32, #tpu.memory_space<vmem>>, vector<1x32xf32>
    %58 = arith.index_cast %c7_i32 : i32 to index
    %c0_16 = arith.constant 0 : index
    %59 = vector.load %arg9[%58, %c0_16] : memref<32x32xf32, #tpu.memory_space<vmem>>, vector<1x32xf32>
    tpu.vector_store %arg9[%58, %c0_16], %57 {strides = array<i32>} : memref<32x32xf32, #tpu.memory_space<vmem>>, vector<1x32xf32>,
    %c8_i32 = arith.constant 8 : i32
    %60 = arith.addi %3, %c8_i32 : i32
    %61 = arith.index_cast %60 : i32 to index
    %62 = memref.load %arg1[%61] : memref<32xi32, #tpu.memory_space<smem>>
    %63 = arith.index_cast %62 : i32 to index
    %c0_17 = arith.constant 0 : index
    %64 = vector.load %arg3[%63, %c0_17] : memref<64x32xf32, #tpu.memory_space<vmem>>, vector<1x32xf32>
    %65 = arith.index_cast %c8_i32 : i32 to index
    %c0_18 = arith.constant 0 : index
    %66 = vector.load %arg9[%65, %c0_18] : memref<32x32xf32, #tpu.memory_space<vmem>>, vector<1x32xf32>
    tpu.vector_store %arg9[%65, %c0_18], %64 {strides = array<i32>} : memref<32x32xf32, #tpu.memory_space<vmem>>, vector<1x32xf32>,
    %c9_i32 = arith.constant 9 : i32
    %67 = arith.addi %3, %c9_i32 : i32
    %68 = arith.index_cast %67 : i32 to index
    %69 = memref.load %arg1[%68] : memref<32xi32, #tpu.memory_space<smem>>
    %70 = arith.index_cast %69 : i32 to index
    %c0_19 = arith.constant 0 : index
    %71 = vector.load %arg3[%70, %c0_19] : memref<64x32xf32, #tpu.memory_space<vmem>>, vector<1x32xf32>
    %72 = arith.index_cast %c9_i32 : i32 to index
    %c0_20 = arith.constant 0 : index
    %73 = vector.load %arg9[%72, %c0_20] : memref<32x32xf32, #tpu.memory_space<vmem>>, vector<1x32xf32>
    tpu.vector_store %arg9[%72, %c0_20], %71 {strides = array<i32>} : memref<32x32xf32, #tpu.memory_space<vmem>>, vector<1x32xf32>,
    %c10_i32 = arith.constant 10 : i32
    %74 = arith.addi %3, %c10_i32 : i32
    %75 = arith.index_cast %74 : i32 to index
    %76 = memref.load %arg1[%75] : memref<32xi32, #tpu.memory_space<smem>>
    %77 = arith.index_cast %76 : i32 to index
    %c0_21 = arith.constant 0 : index
    %78 = vector.load %arg3[%77, %c0_21] : memref<64x32xf32, #tpu.memory_space<vmem>>, vector<1x32xf32>
    %79 = arith.index_cast %c10_i32 : i32 to index
    %c0_22 = arith.constant 0 : index
    %80 = vector.load %arg9[%79, %c0_22] : memref<32x32xf32, #tpu.memory_space<vmem>>, vector<1x32xf32>
    tpu.vector_store %arg9[%79, %c0_22], %78 {strides = array<i32>} : memref<32x32xf32, #tpu.memory_space<vmem>>, vector<1x32xf32>,
    %c11_i32 = arith.constant 11 : i32
    %81 = arith.addi %3, %c11_i32 : i32
    %82 = arith.index_cast %81 : i32 to index
    %83 = memref.load %arg1[%82] : memref<32xi32, #tpu.memory_space<smem>>
    %84 = arith.index_cast %83 : i32 to index
    %c0_23 = arith.constant 0 : index
    %85 = vector.load %arg3[%84, %c0_23] : memref<64x32xf32, #tpu.memory_space<vmem>>, vector<1x32xf32>
    %86 = arith.index_cast %c11_i32 : i32 to index
    %c0_24 = arith.constant 0 : index
    %87 = vector.load %arg9[%86, %c0_24] : memref<32x32xf32, #tpu.memory_space<vmem>>, vector<1x32xf32>
    tpu.vector_store %arg9[%86, %c0_24], %85 {strides = array<i32>} : memref<32x32xf32, #tpu.memory_space<vmem>>, vector<1x32xf32>,
    %c12_i32 = arith.constant 12 : i32
    %88 = arith.addi %3, %c12_i32 : i32
    %89 = arith.index_cast %88 : i32 to index
    %90 = memref.load %arg1[%89] : memref<32xi32, #tpu.memory_space<smem>>
    %91 = arith.index_cast %90 : i32 to index
    %c0_25 = arith.constant 0 : index
    %92 = vector.load %arg3[%91, %c0_25] : memref<64x32xf32, #tpu.memory_space<vmem>>, vector<1x32xf32>
    %93 = arith.index_cast %c12_i32 : i32 to index
    %c0_26 = arith.constant 0 : index
    %94 = vector.load %arg9[%93, %c0_26] : memref<32x32xf32, #tpu.memory_space<vmem>>, vector<1x32xf32>
    tpu.vector_store %arg9[%93, %c0_26], %92 {strides = array<i32>} : memref<32x32xf32, #tpu.memory_space<vmem>>, vector<1x32xf32>,
    %c13_i32 = arith.constant 13 : i32
    %95 = arith.addi %3, %c13_i32 : i32
    %96 = arith.index_cast %95 : i32 to index
    %97 = memref.load %arg1[%96] : memref<32xi32, #tpu.memory_space<smem>>
    %98 = arith.index_cast %97 : i32 to index
    %c0_27 = arith.constant 0 : index
    %99 = vector.load %arg3[%98, %c0_27] : memref<64x32xf32, #tpu.memory_space<vmem>>, vector<1x32xf32>
    %100 = arith.index_cast %c13_i32 : i32 to index
    %c0_28 = arith.constant 0 : index
    %101 = vector.load %arg9[%100, %c0_28] : memref<32x32xf32, #tpu.memory_space<vmem>>, vector<1x32xf32>
    tpu.vector_store %arg9[%100, %c0_28], %99 {strides = array<i32>} : memref<32x32xf32, #tpu.memory_space<vmem>>, vector<1x32xf32>,
    %c14_i32 = arith.constant 14 : i32
    %102 = arith.addi %3, %c14_i32 : i32
    %103 = arith.index_cast %102 : i32 to index
    %104 = memref.load %arg1[%103] : memref<32xi32, #tpu.memory_space<smem>>
    %105 = arith.index_cast %104 : i32 to index
    %c0_29 = arith.constant 0 : index
    %106 = vector.load %arg3[%105, %c0_29] : memref<64x32xf32, #tpu.memory_space<vmem>>, vector<1x32xf32>
    %107 = arith.index_cast %c14_i32 : i32 to index
    %c0_30 = arith.constant 0 : index
    %108 = vector.load %arg9[%107, %c0_30] : memref<32x32xf32, #tpu.memory_space<vmem>>, vector<1x32xf32>
    tpu.vector_store %arg9[%107, %c0_30], %106 {strides = array<i32>} : memref<32x32xf32, #tpu.memory_space<vmem>>, vector<1x32xf32>,
    %c15_i32 = arith.constant 15 : i32
    %109 = arith.addi %3, %c15_i32 : i32
    %110 = arith.index_cast %109 : i32 to index
    %111 = memref.load %arg1[%110] : memref<32xi32, #tpu.memory_space<smem>>
    %112 = arith.index_cast %111 : i32 to index
    %c0_31 = arith.constant 0 : index
    %113 = vector.load %arg3[%112, %c0_31] : memref<64x32xf32, #tpu.memory_space<vmem>>, vector<1x32xf32>
    %114 = arith.index_cast %c15_i32 : i32 to index
    %c0_32 = arith.constant 0 : index
    %115 = vector.load %arg9[%114, %c0_32] : memref<32x32xf32, #tpu.memory_space<vmem>>, vector<1x32xf32>
    tpu.vector_store %arg9[%114, %c0_32], %113 {strides = array<i32>} : memref<32x32xf32, #tpu.memory_space<vmem>>, vector<1x32xf32>,
    %c16_i32 = arith.constant 16 : i32
    %116 = arith.addi %3, %c16_i32 : i32
    %117 = arith.index_cast %116 : i32 to index
    %118 = memref.load %arg1[%117] : memref<32xi32, #tpu.memory_space<smem>>
    %119 = arith.index_cast %118 : i32 to index
    %c0_33 = arith.constant 0 : index
    %120 = vector.load %arg3[%119, %c0_33] : memref<64x32xf32, #tpu.memory_space<vmem>>, vector<1x32xf32>
    %121 = arith.index_cast %c16_i32 : i32 to index
    %c0_34 = arith.constant 0 : index
    %122 = vector.load %arg9[%121, %c0_34] : memref<32x32xf32, #tpu.memory_space<vmem>>, vector<1x32xf32>
    tpu.vector_store %arg9[%121, %c0_34], %120 {strides = array<i32>} : memref<32x32xf32, #tpu.memory_space<vmem>>, vector<1x32xf32>,
    %c17_i32 = arith.constant 17 : i32
    %123 = arith.addi %3, %c17_i32 : i32
    %124 = arith.index_cast %123 : i32 to index
    %125 = memref.load %arg1[%124] : memref<32xi32, #tpu.memory_space<smem>>
    %126 = arith.index_cast %125 : i32 to index
    %c0_35 = arith.constant 0 : index
    %127 = vector.load %arg3[%126, %c0_35] : memref<64x32xf32, #tpu.memory_space<vmem>>, vector<1x32xf32>
    %128 = arith.index_cast %c17_i32 : i32 to index
    %c0_36 = arith.constant 0 : index
    %129 = vector.load %arg9[%128, %c0_36] : memref<32x32xf32, #tpu.memory_space<vmem>>, vector<1x32xf32>
    tpu.vector_store %arg9[%128, %c0_36], %127 {strides = array<i32>} : memref<32x32xf32, #tpu.memory_space<vmem>>, vector<1x32xf32>,
    %c18_i32 = arith.constant 18 : i32
    %130 = arith.addi %3, %c18_i32 : i32
    %131 = arith.index_cast %130 : i32 to index
    %132 = memref.load %arg1[%131] : memref<32xi32, #tpu.memory_space<smem>>
    %133 = arith.index_cast %132 : i32 to index
    %c0_37 = arith.constant 0 : index
    %134 = vector.load %arg3[%133, %c0_37] : memref<64x32xf32, #tpu.memory_space<vmem>>, vector<1x32xf32>
    %135 = arith.index_cast %c18_i32 : i32 to index
    %c0_38 = arith.constant 0 : index
    %136 = vector.load %arg9[%135, %c0_38] : memref<32x32xf32, #tpu.memory_space<vmem>>, vector<1x32xf32>
    tpu.vector_store %arg9[%135, %c0_38], %134 {strides = array<i32>} : memref<32x32xf32, #tpu.memory_space<vmem>>, vector<1x32xf32>,
    %c19_i32 = arith.constant 19 : i32
    %137 = arith.addi %3, %c19_i32 : i32
    %138 = arith.index_cast %137 : i32 to index
    %139 = memref.load %arg1[%138] : memref<32xi32, #tpu.memory_space<smem>>
    %140 = arith.index_cast %139 : i32 to index
    %c0_39 = arith.constant 0 : index
    %141 = vector.load %arg3[%140, %c0_39] : memref<64x32xf32, #tpu.memory_space<vmem>>, vector<1x32xf32>
    %142 = arith.index_cast %c19_i32 : i32 to index
    %c0_40 = arith.constant 0 : index
    %143 = vector.load %arg9[%142, %c0_40] : memref<32x32xf32, #tpu.memory_space<vmem>>, vector<1x32xf32>
    tpu.vector_store %arg9[%142, %c0_40], %141 {strides = array<i32>} : memref<32x32xf32, #tpu.memory_space<vmem>>, vector<1x32xf32>,
    %c20_i32 = arith.constant 20 : i32
    %144 = arith.addi %3, %c20_i32 : i32
    %145 = arith.index_cast %144 : i32 to index
    %146 = memref.load %arg1[%145] : memref<32xi32, #tpu.memory_space<smem>>
    %147 = arith.index_cast %146 : i32 to index
    %c0_41 = arith.constant 0 : index
    %148 = vector.load %arg3[%147, %c0_41] : memref<64x32xf32, #tpu.memory_space<vmem>>, vector<1x32xf32>
    %149 = arith.index_cast %c20_i32 : i32 to index
    %c0_42 = arith.constant 0 : index
    %150 = vector.load %arg9[%149, %c0_42] : memref<32x32xf32, #tpu.memory_space<vmem>>, vector<1x32xf32>
    tpu.vector_store %arg9[%149, %c0_42], %148 {strides = array<i32>} : memref<32x32xf32, #tpu.memory_space<vmem>>, vector<1x32xf32>,
    %c21_i32 = arith.constant 21 : i32
    %151 = arith.addi %3, %c21_i32 : i32
    %152 = arith.index_cast %151 : i32 to index
    %153 = memref.load %arg1[%152] : memref<32xi32, #tpu.memory_space<smem>>
    %154 = arith.index_cast %153 : i32 to index
    %c0_43 = arith.constant 0 : index
    %155 = vector.load %arg3[%154, %c0_43] : memref<64x32xf32, #tpu.memory_space<vmem>>, vector<1x32xf32>
    %156 = arith.index_cast %c21_i32 : i32 to index
    %c0_44 = arith.constant 0 : index
    %157 = vector.load %arg9[%156, %c0_44] : memref<32x32xf32, #tpu.memory_space<vmem>>, vector<1x32xf32>
    tpu.vector_store %arg9[%156, %c0_44], %155 {strides = array<i32>} : memref<32x32xf32, #tpu.memory_space<vmem>>, vector<1x32xf32>,
    %c22_i32 = arith.constant 22 : i32
    %158 = arith.addi %3, %c22_i32 : i32
    %159 = arith.index_cast %158 : i32 to index
    %160 = memref.load %arg1[%159] : memref<32xi32, #tpu.memory_space<smem>>
    %161 = arith.index_cast %160 : i32 to index
    %c0_45 = arith.constant 0 : index
    %162 = vector.load %arg3[%161, %c0_45] : memref<64x32xf32, #tpu.memory_space<vmem>>, vector<1x32xf32>
    %163 = arith.index_cast %c22_i32 : i32 to index
    %c0_46 = arith.constant 0 : index
    %164 = vector.load %arg9[%163, %c0_46] : memref<32x32xf32, #tpu.memory_space<vmem>>, vector<1x32xf32>
    tpu.vector_store %arg9[%163, %c0_46], %162 {strides = array<i32>} : memref<32x32xf32, #tpu.memory_space<vmem>>, vector<1x32xf32>,
    %c23_i32 = arith.constant 23 : i32
    %165 = arith.addi %3, %c23_i32 : i32
    %166 = arith.index_cast %165 : i32 to index
    %167 = memref.load %arg1[%166] : memref<32xi32, #tpu.memory_space<smem>>
    %168 = arith.index_cast %167 : i32 to index
    %c0_47 = arith.constant 0 : index
    %169 = vector.load %arg3[%168, %c0_47] : memref<64x32xf32, #tpu.memory_space<vmem>>, vector<1x32xf32>
    %170 = arith.index_cast %c23_i32 : i32 to index
    %c0_48 = arith.constant 0 : index
    %171 = vector.load %arg9[%170, %c0_48] : memref<32x32xf32, #tpu.memory_space<vmem>>, vector<1x32xf32>
    tpu.vector_store %arg9[%170, %c0_48], %169 {strides = array<i32>} : memref<32x32xf32, #tpu.memory_space<vmem>>, vector<1x32xf32>,
    %c24_i32 = arith.constant 24 : i32
    %172 = arith.addi %3, %c24_i32 : i32
    %173 = arith.index_cast %172 : i32 to index
    %174 = memref.load %arg1[%173] : memref<32xi32, #tpu.memory_space<smem>>
    %175 = arith.index_cast %174 : i32 to index
    %c0_49 = arith.constant 0 : index
    %176 = vector.load %arg3[%175, %c0_49] : memref<64x32xf32, #tpu.memory_space<vmem>>, vector<1x32xf32>
    %177 = arith.index_cast %c24_i32 : i32 to index
    %c0_50 = arith.constant 0 : index
    %178 = vector.load %arg9[%177, %c0_50] : memref<32x32xf32, #tpu.memory_space<vmem>>, vector<1x32xf32>
    tpu.vector_store %arg9[%177, %c0_50], %176 {strides = array<i32>} : memref<32x32xf32, #tpu.memory_space<vmem>>, vector<1x32xf32>,
    %c25_i32 = arith.constant 25 : i32
    %179 = arith.addi %3, %c25_i32 : i32
    %180 = arith.index_cast %179 : i32 to index
    %181 = memref.load %arg1[%180] : memref<32xi32, #tpu.memory_space<smem>>
    %182 = arith.index_cast %181 : i32 to index
    %c0_51 = arith.constant 0 : index
    %183 = vector.load %arg3[%182, %c0_51] : memref<64x32xf32, #tpu.memory_space<vmem>>, vector<1x32xf32>
    %184 = arith.index_cast %c25_i32 : i32 to index
    %c0_52 = arith.constant 0 : index
    %185 = vector.load %arg9[%184, %c0_52] : memref<32x32xf32, #tpu.memory_space<vmem>>, vector<1x32xf32>
    tpu.vector_store %arg9[%184, %c0_52], %183 {strides = array<i32>} : memref<32x32xf32, #tpu.memory_space<vmem>>, vector<1x32xf32>,
    %c26_i32 = arith.constant 26 : i32
    %186 = arith.addi %3, %c26_i32 : i32
    %187 = arith.index_cast %186 : i32 to index
    %188 = memref.load %arg1[%187] : memref<32xi32, #tpu.memory_space<smem>>
    %189 = arith.index_cast %188 : i32 to index
    %c0_53 = arith.constant 0 : index
    %190 = vector.load %arg3[%189, %c0_53] : memref<64x32xf32, #tpu.memory_space<vmem>>, vector<1x32xf32>
    %191 = arith.index_cast %c26_i32 : i32 to index
    %c0_54 = arith.constant 0 : index
    %192 = vector.load %arg9[%191, %c0_54] : memref<32x32xf32, #tpu.memory_space<vmem>>, vector<1x32xf32>
    tpu.vector_store %arg9[%191, %c0_54], %190 {strides = array<i32>} : memref<32x32xf32, #tpu.memory_space<vmem>>, vector<1x32xf32>,
    %c27_i32 = arith.constant 27 : i32
    %193 = arith.addi %3, %c27_i32 : i32
    %194 = arith.index_cast %193 : i32 to index
    %195 = memref.load %arg1[%194] : memref<32xi32, #tpu.memory_space<smem>>
    %196 = arith.index_cast %195 : i32 to index
    %c0_55 = arith.constant 0 : index
    %197 = vector.load %arg3[%196, %c0_55] : memref<64x32xf32, #tpu.memory_space<vmem>>, vector<1x32xf32>
    %198 = arith.index_cast %c27_i32 : i32 to index
    %c0_56 = arith.constant 0 : index
    %199 = vector.load %arg9[%198, %c0_56] : memref<32x32xf32, #tpu.memory_space<vmem>>, vector<1x32xf32>
    tpu.vector_store %arg9[%198, %c0_56], %197 {strides = array<i32>} : memref<32x32xf32, #tpu.memory_space<vmem>>, vector<1x32xf32>,
    %c28_i32 = arith.constant 28 : i32
    %200 = arith.addi %3, %c28_i32 : i32
    %201 = arith.index_cast %200 : i32 to index
    %202 = memref.load %arg1[%201] : memref<32xi32, #tpu.memory_space<smem>>
    %203 = arith.index_cast %202 : i32 to index
    %c0_57 = arith.constant 0 : index
    %204 = vector.load %arg3[%203, %c0_57] : memref<64x32xf32, #tpu.memory_space<vmem>>, vector<1x32xf32>
    %205 = arith.index_cast %c28_i32 : i32 to index
    %c0_58 = arith.constant 0 : index
    %206 = vector.load %arg9[%205, %c0_58] : memref<32x32xf32, #tpu.memory_space<vmem>>, vector<1x32xf32>
    tpu.vector_store %arg9[%205, %c0_58], %204 {strides = array<i32>} : memref<32x32xf32, #tpu.memory_space<vmem>>, vector<1x32xf32>,
    %c29_i32 = arith.constant 29 : i32
    %207 = arith.addi %3, %c29_i32 : i32
    %208 = arith.index_cast %207 : i32 to index
    %209 = memref.load %arg1[%208] : memref<32xi32, #tpu.memory_space<smem>>
    %210 = arith.index_cast %209 : i32 to index
    %c0_59 = arith.constant 0 : index
    %211 = vector.load %arg3[%210, %c0_59] : memref<64x32xf32, #tpu.memory_space<vmem>>, vector<1x32xf32>
    %212 = arith.index_cast %c29_i32 : i32 to index
    %c0_60 = arith.constant 0 : index
    %213 = vector.load %arg9[%212, %c0_60] : memref<32x32xf32, #tpu.memory_space<vmem>>, vector<1x32xf32>
    tpu.vector_store %arg9[%212, %c0_60], %211 {strides = array<i32>} : memref<32x32xf32, #tpu.memory_space<vmem>>, vector<1x32xf32>,
    %c30_i32 = arith.constant 30 : i32
    %214 = arith.addi %3, %c30_i32 : i32
    %215 = arith.index_cast %214 : i32 to index
    %216 = memref.load %arg1[%215] : memref<32xi32, #tpu.memory_space<smem>>
    %217 = arith.index_cast %216 : i32 to index
    %c0_61 = arith.constant 0 : index
    %218 = vector.load %arg3[%217, %c0_61] : memref<64x32xf32, #tpu.memory_space<vmem>>, vector<1x32xf32>
    %219 = arith.index_cast %c30_i32 : i32 to index
    %c0_62 = arith.constant 0 : index
    %220 = vector.load %arg9[%219, %c0_62] : memref<32x32xf32, #tpu.memory_space<vmem>>, vector<1x32xf32>
    tpu.vector_store %arg9[%219, %c0_62], %218 {strides = array<i32>} : memref<32x32xf32, #tpu.memory_space<vmem>>, vector<1x32xf32>,
    %c31_i32 = arith.constant 31 : i32
    %221 = arith.addi %3, %c31_i32 : i32
    %222 = arith.index_cast %221 : i32 to index
    %223 = memref.load %arg1[%222] : memref<32xi32, #tpu.memory_space<smem>>
    %224 = arith.index_cast %223 : i32 to index
    %c0_63 = arith.constant 0 : index
    %225 = vector.load %arg3[%224, %c0_63] : memref<64x32xf32, #tpu.memory_space<vmem>>, vector<1x32xf32>
    %226 = arith.index_cast %c31_i32 : i32 to index
    %c0_64 = arith.constant 0 : index
    %227 = vector.load %arg9[%226, %c0_64] : memref<32x32xf32, #tpu.memory_space<vmem>>, vector<1x32xf32>
    tpu.vector_store %arg9[%226, %c0_64], %225 {strides = array<i32>} : memref<32x32xf32, #tpu.memory_space<vmem>>, vector<1x32xf32>,
    %c32_i32_65 = arith.constant 32 : i32
    %228 = arith.index_cast %arg0 : i32 to index
    %c0_66 = arith.constant 0 : index
    %229 = vector.load %arg2[%228, %c0_66] : memref<1x32xi32, #tpu.memory_space<vmem>>, vector<1x32xi32>
    %230 = tpu.iota {dimensions = array<i32: 0>} : vector<2x32xi32>
    %231 = vector.broadcast %229 : vector<1x32xi32> to vector<2x32xi32>
    %232 = arith.cmpi eq, %231, %230 : vector<2x32xi32>
    %233 = arith.extui %232 : vector<2x32xi1> to vector<2x32xi32>
    %234 = arith.sitofp %233 : vector<2x32xi32> to vector<2x32xf32>
    %c0_67 = arith.constant 0 : index
    %c0_68 = arith.constant 0 : index
    %235 = vector.load %arg8[%c0_67, %c0_68] : memref<2x32xf32, #tpu.memory_space<vmem>>, vector<2x32xf32>
    %c0_69 = arith.constant 0 : index
    %c0_70 = arith.constant 0 : index
    %236 = vector.load %arg9[%c0_69, %c0_70] : memref<32x32xf32, #tpu.memory_space<vmem>>, vector<32x32xf32>
    %cst = arith.constant dense<0.000000e+00> : vector<2x32xf32>
    %237 = tpu.matmul %234, %236, %cst {dimension_numbers = #tpu.dot_dimension_numbers<[1], [0], [0], [1], [0, 0, 1, 1], [], []>} : vector<2x32xf32>, vector<32x32xf32>, vector<2x32xf32> -> vector<2x32xf32>
    %238 = arith.addf %235, %237 : vector<2x32xf32>
    %c0_71 = arith.constant 0 : index
    %c0_72 = arith.constant 0 : index
    %239 = vector.load %arg8[%c0_71, %c0_72] : memref<2x32xf32, #tpu.memory_space<vmem>>, vector<2x32xf32>
    tpu.vector_store %arg8[%c0_71, %c0_72], %238 {strides = array<i32>} : memref<2x32xf32, #tpu.memory_space<vmem>>, vector<2x32xf32>,
    %c0_i32_73 = arith.constant 0 : i32
    %240 = arith.cmpi eq, %arg0, %c0_i32_73 : i32
    %241 = arith.extui %240 : i1 to i32
    %c0_i32_74 = arith.constant 0 : i32
    %242 = arith.cmpi ne, %241, %c0_i32_74 : i32
    scf.if %242 {
      %c0_75 = arith.constant 0 : index
      %c0_76 = arith.constant 0 : index
      %243 = vector.load %arg8[%c0_75, %c0_76] : memref<2x32xf32, #tpu.memory_space<vmem>>, vector<2x32xf32>
      %c0_77 = arith.constant 0 : index
      %c0_78 = arith.constant 0 : index
      %244 = vector.load %arg6[%c0_77, %c0_78] : memref<2x1xf32, #tpu.memory_space<vmem>>, vector<2x1xf32>
      %245 = vector.broadcast %244 : vector<2x1xf32> to vector<2x32xf32>
      %246 = arith.mulf %243, %245 : vector<2x32xf32>
      %c0_79 = arith.constant 0 : index
      %c0_80 = arith.constant 0 : index
      %247 = vector.load %arg4[%c0_79, %c0_80] : memref<32x128xf32, #tpu.memory_space<vmem>>, vector<32x128xf32>
      %cst_81 = arith.constant dense<0.000000e+00> : vector<2x128xf32>
      %248 = tpu.matmul %246, %247, %cst_81 {dimension_numbers = #tpu.dot_dimension_numbers<[1], [0], [0], [1], [0, 0, 1, 1], [], []>} : vector<2x32xf32>, vector<32x128xf32>, vector<2x128xf32> -> vector<2x128xf32>
      %c0_82 = arith.constant 0 : index
      %c0_83 = arith.constant 0 : index
      %249 = vector.load %arg5[%c0_82, %c0_83] : memref<1x128xf32, #tpu.memory_space<vmem>>, vector<1x128xf32>
      %250 = vector.broadcast %249 : vector<1x128xf32> to vector<2x128xf32>
      %251 = arith.addf %248, %250 : vector<2x128xf32>
      %c0_84 = arith.constant 0 : index
      %c0_85 = arith.constant 0 : index
      %252 = vector.load %arg7[%c0_84, %c0_85] : memref<2x128xf32, #tpu.memory_space<vmem>>, vector<2x128xf32>
      tpu.vector_store %arg7[%c0_84, %c0_85], %251 {strides = array<i32>} : memref<2x128xf32, #tpu.memory_space<vmem>>, vector<2x128xf32>,
    } else {
    }
    return
  }
  func.func @transform_0(%arg0: i32, %arg1: memref<32xi32, #tpu.memory_space<smem>>) -> (i32, i32) {
    %c0_i32 = arith.constant 0 : i32
    %c0_i32_0 = arith.constant 0 : i32
    %c0_i32_1 = arith.constant 0 : i32
    return %c0_i32, %c0_i32_0 : i32, i32
  }
  func.func @transform_1(%arg0: i32, %arg1: memref<32xi32, #tpu.memory_space<smem>>) -> (i32, i32) {
    %c0_i32 = arith.constant 0 : i32
    %c0_i32_0 = arith.constant 0 : i32
    %c0_i32_1 = arith.constant 0 : i32
    return %c0_i32, %c0_i32_0 : i32, i32
  }
  func.func @transform_2(%arg0: i32, %arg1: memref<32xi32, #tpu.memory_space<smem>>) -> (i32, i32) {
    %c0_i32 = arith.constant 0 : i32
    %c0_i32_0 = arith.constant 0 : i32
    %c0_i32_1 = arith.constant 0 : i32
    return %c0_i32, %c0_i32_0 : i32, i32
  }
  func.func @transform_3(%arg0: i32, %arg1: memref<32xi32, #tpu.memory_space<smem>>) -> (i32, i32) {
    %c0_i32 = arith.constant 0 : i32
    %c0_i32_0 = arith.constant 0 : i32
    %c0_i32_1 = arith.constant 0 : i32
    return %c0_i32, %c0_i32_0 : i32, i32
  }
  func.func @transform_4(%arg0: i32, %arg1: memref<32xi32, #tpu.memory_space<smem>>) -> (i32, i32) {
    %c0_i32 = arith.constant 0 : i32
    %c0_i32_0 = arith.constant 0 : i32
    %c0_i32_1 = arith.constant 0 : i32
    return %c0_i32, %c0_i32_0 : i32, i32
  }
  func.func @transform_5(%arg0: i32, %arg1: memref<32xi32, #tpu.memory_space<smem>>) -> (i32, i32) {
    %c0_i32 = arith.constant 0 : i32
    %c0_i32_0 = arith.constant 0 : i32
    %c0_i32_1 = arith.constant 0 : i32
    return %c0_i32, %c0_i32_0 : i32, i32
  }
}

</mosaic_0001>

<llo_original>
// kernel: tpu_custom_call.1
$region0: #{tpu_custom_call.1}
  #allocation0 [shape = 'u32[]', space=smem, size = 0x4, offset = 0x4, fixed_abs, tag = 'smem constant byte address 0x4 - core index']
  #allocation1 [shape = 'u32[144,128]{1,0:T(1,128)}', space=vmem, size = 0x12000, scoped, tag = 'internal scratch']
  #allocation2 [shape = 'f32[2,32]{1,0:T(2,128)}', space=vmem, size = 0x400, scoped, tag = 'scratch operand']
  #allocation3 [shape = 'f32[32,32]{1,0:T(8,128)}', space=vmem, size = 0x4000, scoped, tag = 'scratch operand']
  #allocation4 [shape = 's32[1]{0}', space=sflag, size = 0x4, scoped, tag = 'scoped memory for tpu_custom_call.1']
  #allocation5 [shape = 'u8[512]{0}', space=smem, size = 0x200, scoped, tag = 'prefetched SMEM operand 0']
  %s0 = inlined_call_operand.vmem [shape: s32[32], index: 0, kind: input, shape index: {}]
  %s1 = inlined_call_operand.vmem [shape: s32[1,32], index: 1, kind: input, shape index: {}]
  %s2 = inlined_call_operand.vmem [shape: f32[64,32], index: 2, kind: input, shape index: {}]
  %s3 = inlined_call_operand.vmem [shape: f32[32,128], index: 3, kind: input, shape index: {}]
  %s4 = inlined_call_operand.vmem [shape: f32[1,128], index: 4, kind: input, shape index: {}]
  %s5 = inlined_call_operand.vmem [shape: f32[2,1], index: 5, kind: input, shape index: {}]
  %s6 = inlined_call_operand.hbm [shape: f32[2,128], index: 6, kind: output, shape index: {}]
  %s7 = sld [smem:[#allocation0]]
  $region38: #{tpu_custom_call.1} parent=0
    _
  %s9 = ssub.s32 1, %s7
  %s10 = scalar_select 0, %s9, %s7
  %s11 = sshll.u32 %s0, 4
  %s12 = int_to_ptr.vmem [resolvable:$true] %s11
  %14 = dma.vmem_to_smem %s12, 16, [#allocation5], [#allocation4]
  %15 = dma.done [#allocation4], 16
  %16 = sfence
  $region1: #{tpu_custom_call.1} parent=0
    #allocation6 [shape = 'u8[1024]{0}', space=vmem, size = 0x400, scoped, tag = 'output window, operand 0, single buffered']
    #allocation7 [shape = 's32[1]{0}', space=sflag, size = 0x4, scoped, tag = 'scoped memory for tpu_custom_call.1']
    %17 = vsyncpa [#allocation7], 0
    // Predicated region
    $region2: #{tpu_custom_call.1} parent=1 // pred_check
      _
    $region3: #{tpu_custom_call.1} parent=1 // pred_check_branch
      %19 = sbr.rel (0) target = $region5
    $region4: #{tpu_custom_call.1} parent=1 // pred_region
      _
    $region5: #{tpu_custom_call.1} parent=1 // pred_fallthru
      _
    // Predicated region
    $region6: #{tpu_custom_call.1} parent=1 // pred_check
      _
    $region7: #{tpu_custom_call.1} parent=1 // pred_check_branch
      %21 = sbr.rel (0) target = $region9
    $region8: #{tpu_custom_call.1} parent=1 // pred_region
      _
    $region9: #{tpu_custom_call.1} parent=1 // pred_fallthru
      _
    // Predicated region
    $region10: #{tpu_custom_call.1} parent=1 // pred_check
      _
    $region11: #{tpu_custom_call.1} parent=1 // pred_check_branch
      %23 = sbr.rel (0) target = $region13
    $region12: #{tpu_custom_call.1} parent=1 // pred_region
      _
    $region13: #{tpu_custom_call.1} parent=1 // pred_fallthru
      _
    // Predicated region
    $region14: #{tpu_custom_call.1} parent=1 // pred_check
      _
    $region15: #{tpu_custom_call.1} parent=1 // pred_check_branch
      %25 = sbr.rel (0) target = $region17
    $region16: #{tpu_custom_call.1} parent=1 // pred_region
      _
    $region17: #{tpu_custom_call.1} parent=1 // pred_fallthru
      _
    // Predicated region
    $region18: #{tpu_custom_call.1} parent=1 // pred_check
      _
    $region19: #{tpu_custom_call.1} parent=1 // pred_check_branch
      %27 = sbr.rel (0) target = $region21
    $region20: #{tpu_custom_call.1} parent=1 // pred_region
      _
    $region21: #{tpu_custom_call.1} parent=1 // pred_fallthru
      _
    %p28 = scmp.eq.s32.totalorder 0, 0
    // Predicated region
    $region22: #{tpu_custom_call.1} parent=1 // pred_check
      %p29 = pneg %p28
    $region23: #{tpu_custom_call.1} parent=1 // pred_check_branch
      %31 = sbr.rel (%p29) target = $region25
    $region24: #{tpu_custom_call.1} parent=1 // pred_region
      %vm32 = vcmask 254976
      %33 = vst.msk [vmem:[#allocation2] sm:$0x3] %vm32, 0.0
    $region25: #{tpu_custom_call.1} parent=1 // pred_fallthru
      _
    %s34 = smul.u32 0, 32
    %s35 = sld [smem:[#allocation5 + %s34]]
    %s36 = scalar_lea.vmem %s2, %s35
    %v37 = vld [vmem:[%s36] sm:$0x1]
    %vm38 = vcmask 253952
    %39 = vst.msk [vmem:[#allocation3] sm:$0x1] %vm38, %v37
    %s40 = sadd.s32 %s34, 1
    %s41 = sld [smem:[#allocation5 + %s40]]
    %s42 = scalar_lea.vmem %s2, %s41
    %v43 = vld [vmem:[%s42] sm:$0x1]
    %44 = vst.msk [vmem:[#allocation3 + $0x1] sm:$0x1] %vm38, %v43
    %s45 = sadd.s32 %s34, 2
    %s46 = sld [smem:[#allocation5 + %s45]]
    %s47 = scalar_lea.vmem %s2, %s46
    %v48 = vld [vmem:[%s47] sm:$0x1]
    %49 = vst.msk [vmem:[#allocation3 + $0x2] sm:$0x1] %vm38, %v48
    %s50 = sadd.s32 %s34, 3
    %s51 = sld [smem:[#allocation5 + %s50]]
    %s52 = scalar_lea.vmem %s2, %s51
    %v53 = vld [vmem:[%s52] sm:$0x1]
    %54 = vst.msk [vmem:[#allocation3 + $0x3] sm:$0x1] %vm38, %v53
    %s55 = sadd.s32 %s34, 4
    %s56 = sld [smem:[#allocation5 + %s55]]
    %s57 = scalar_lea.vmem %s2, %s56
    %v58 = vld [vmem:[%s57] sm:$0x1]
    %59 = vst.msk [vmem:[#allocation3 + $0x4] sm:$0x1] %vm38, %v58
    %s60 = sadd.s32 %s34, 5
    %s61 = sld [smem:[#allocation5 + %s60]]
    %s62 = scalar_lea.vmem %s2, %s61
    %v63 = vld [vmem:[%s62] sm:$0x1]
    %64 = vst.msk [vmem:[#allocation3 + $0x5] sm:$0x1] %vm38, %v63
    %s65 = sadd.s32 %s34, 6
    %s66 = sld [smem:[#allocation5 + %s65]]
    %s67 = scalar_lea.vmem %s2, %s66
    %v68 = vld [vmem:[%s67] sm:$0x1]
    %69 = vst.msk [vmem:[#allocation3 + $0x6] sm:$0x1] %vm38, %v68
    %s70 = sadd.s32 %s34, 7
    %s71 = sld [smem:[#allocation5 + %s70]]
    %s72 = scalar_lea.vmem %s2, %s71
    %v73 = vld [vmem:[%s72] sm:$0x1]
    %74 = vst.msk [vmem:[#allocation3 + $0x7] sm:$0x1] %vm38, %v73
    %s75 = sadd.s32 %s34, 8
    %s76 = sld [smem:[#allocation5 + %s75]]
    %s77 = scalar_lea.vmem %s2, %s76
    %v78 = vld [vmem:[%s77] sm:$0x1]
    %79 = vst.msk [vmem:[#allocation3 + $0x8] sm:$0x1] %vm38, %v78
    %s80 = sadd.s32 %s34, 9
    %s81 = sld [smem:[#allocation5 + %s80]]
    %s82 = scalar_lea.vmem %s2, %s81
    %v83 = vld [vmem:[%s82] sm:$0x1]
    %84 = vst.msk [vmem:[#allocation3 + $0x9] sm:$0x1] %vm38, %v83
    %s85 = sadd.s32 %s34, 10
    %s86 = sld [smem:[#allocation5 + %s85]]
    %s87 = scalar_lea.vmem %s2, %s86
    %v88 = vld [vmem:[%s87] sm:$0x1]
    %89 = vst.msk [vmem:[#allocation3 + $0xa] sm:$0x1] %vm38, %v88
    %s90 = sadd.s32 %s34, 11
    %s91 = sld [smem:[#allocation5 + %s90]]
    %s92 = scalar_lea.vmem %s2, %s91
    %v93 = vld [vmem:[%s92] sm:$0x1]
    %94 = vst.msk [vmem:[#allocation3 + $0xb] sm:$0x1] %vm38, %v93
    %s95 = sadd.s32 %s34, 12
    %s96 = sld [smem:[#allocation5 + %s95]]
    %s97 = scalar_lea.vmem %s2, %s96
    %v98 = vld [vmem:[%s97] sm:$0x1]
    %99 = vst.msk [vmem:[#allocation3 + $0xc] sm:$0x1] %vm38, %v98
    %s100 = sadd.s32 %s34, 13
    %s101 = sld [smem:[#allocation5 + %s100]]
    %s102 = scalar_lea.vmem %s2, %s101
    %v103 = vld [vmem:[%s102] sm:$0x1]
    %104 = vst.msk [vmem:[#allocation3 + $0xd] sm:$0x1] %vm38, %v103
    %s105 = sadd.s32 %s34, 14
    %s106 = sld [smem:[#allocation5 + %s105]]
    %s107 = scalar_lea.vmem %s2, %s106
    %v108 = vld [vmem:[%s107] sm:$0x1]
    %109 = vst.msk [vmem:[#allocation3 + $0xe] sm:$0x1] %vm38, %v108
    %s110 = sadd.s32 %s34, 15
    %s111 = sld [smem:[#allocation5 + %s110]]
    %s112 = scalar_lea.vmem %s2, %s111
    %v113 = vld [vmem:[%s112] sm:$0x1]
    %114 = vst.msk [vmem:[#allocation3 + $0xf] sm:$0x1] %vm38, %v113
    %s115 = sadd.s32 %s34, 16
    %s116 = sld [smem:[#allocation5 + %s115]]
    %s117 = scalar_lea.vmem %s2, %s116
    %v118 = vld [vmem:[%s117] sm:$0x1]
    %119 = vst.msk [vmem:[#allocation3 + $0x10] sm:$0x1] %vm38, %v118
    %s120 = sadd.s32 %s34, 17
    %s121 = sld [smem:[#allocation5 + %s120]]
    %s122 = scalar_lea.vmem %s2, %s121
    %v123 = vld [vmem:[%s122] sm:$0x1]
    %124 = vst.msk [vmem:[#allocation3 + $0x11] sm:$0x1] %vm38, %v123
    %s125 = sadd.s32 %s34, 18
    %s126 = sld [smem:[#allocation5 + %s125]]
    %s127 = scalar_lea.vmem %s2, %s126
    %v128 = vld [vmem:[%s127] sm:$0x1]
    %129 = vst.msk [vmem:[#allocation3 + $0x12] sm:$0x1] %vm38, %v128
    %s130 = sadd.s32 %s34, 19
    %s131 = sld [smem:[#allocation5 + %s130]]
    %s132 = scalar_lea.vmem %s2, %s131
    %v133 = vld [vmem:[%s132] sm:$0x1]
    %134 = vst.msk [vmem:[#allocation3 + $0x13] sm:$0x1] %vm38, %v133
    %s135 = sadd.s32 %s34, 20
    %s136 = sld [smem:[#allocation5 + %s135]]
    %s137 = scalar_lea.vmem %s2, %s136
    %v138 = vld [vmem:[%s137] sm:$0x1]
    %139 = vst.msk [vmem:[#allocation3 + $0x14] sm:$0x1] %vm38, %v138
    %s140 = sadd.s32 %s34, 21
    %s141 = sld [smem:[#allocation5 + %s140]]
    %s142 = scalar_lea.vmem %s2, %s141
    %v143 = vld [vmem:[%s142] sm:$0x1]
    %144 = vst.msk [vmem:[#allocation3 + $0x15] sm:$0x1] %vm38, %v143
    %s145 = sadd.s32 %s34, 22
    %s146 = sld [smem:[#allocation5 + %s145]]
    %s147 = scalar_lea.vmem %s2, %s146
    %v148 = vld [vmem:[%s147] sm:$0x1]
    %149 = vst.msk [vmem:[#allocation3 + $0x16] sm:$0x1] %vm38, %v148
    %s150 = sadd.s32 %s34, 23
    %s151 = sld [smem:[#allocation5 + %s150]]
    %s152 = scalar_lea.vmem %s2, %s151
    %v153 = vld [vmem:[%s152] sm:$0x1]
    %154 = vst.msk [vmem:[#allocation3 + $0x17] sm:$0x1] %vm38, %v153
    %s155 = sadd.s32 %s34, 24
    %s156 = sld [smem:[#allocation5 + %s155]]
    %s157 = scalar_lea.vmem %s2, %s156
    %v158 = vld [vmem:[%s157] sm:$0x1]
    %159 = vst.msk [vmem:[#allocation3 + $0x18] sm:$0x1] %vm38, %v158
    %s160 = sadd.s32 %s34, 25
    %s161 = sld [smem:[#allocation5 + %s160]]
    %s162 = scalar_lea.vmem %s2, %s161
    %v163 = vld [vmem:[%s162] sm:$0x1]
    %164 = vst.msk [vmem:[#allocation3 + $0x19] sm:$0x1] %vm38, %v163
    %s165 = sadd.s32 %s34, 26
    %s166 = sld [smem:[#allocation5 + %s165]]
    %s167 = scalar_lea.vmem %s2, %s166
    %v168 = vld [vmem:[%s167] sm:$0x1]
    %169 = vst.msk [vmem:[#allocation3 + $0x1a] sm:$0x1] %vm38, %v168
    %s170 = sadd.s32 %s34, 27
    %s171 = sld [smem:[#allocation5 + %s170]]
    %s172 = scalar_lea.vmem %s2, %s171
    %v173 = vld [vmem:[%s172] sm:$0x1]
    %174 = vst.msk [vmem:[#allocation3 + $0x1b] sm:$0x1] %vm38, %v173
    %s175 = sadd.s32 %s34, 28
    %s176 = sld [smem:[#allocation5 + %s175]]
    %s177 = scalar_lea.vmem %s2, %s176
    %v178 = vld [vmem:[%s177] sm:$0x1]
    %179 = vst.msk [vmem:[#allocation3 + $0x1c] sm:$0x1] %vm38, %v178
    %s180 = sadd.s32 %s34, 29
    %s181 = sld [smem:[#allocation5 + %s180]]
    %s182 = scalar_lea.vmem %s2, %s181
    %v183 = vld [vmem:[%s182] sm:$0x1]
    %184 = vst.msk [vmem:[#allocation3 + $0x1d] sm:$0x1] %vm38, %v183
    %s185 = sadd.s32 %s34, 30
    %s186 = sld [smem:[#allocation5 + %s185]]
    %s187 = scalar_lea.vmem %s2, %s186
    %v188 = vld [vmem:[%s187] sm:$0x1]
    %189 = vst.msk [vmem:[#allocation3 + $0x1e] sm:$0x1] %vm38, %v188
    %s190 = sadd.s32 %s34, 31
    %s191 = sld [smem:[#allocation5 + %s190]]
    %s192 = scalar_lea.vmem %s2, %s191
    %v193 = vld [vmem:[%s192] sm:$0x1]
    %194 = vst.msk [vmem:[#allocation3 + $0x1f] sm:$0x1] %vm38, %v193
    %v195 = vld [vmem:[%s1] sm:$0x1]
    %v196 = vlaneseq
    %v197 = vshrl.u32 %v196, 7
    %v198 = vlaneseq
    %v199 = vshrl.u32 %v198, 7
    %v200 = vsub.s32 0, %v199
    %v201 = vrot.slane %v195, %v200
    %vm202 = vcmp.eq.s32.totalorder %v201, %v197
    %v203 = vsel %vm202, 1, 0
    %v204 = vcvt.s32.f32 %v203
    %v205 = vld [vmem:[#allocation2] sm:$0x3]
    %v206 = vld [vmem:[#allocation3] sm:$0xff]
    %v207 = vld [vmem:[#allocation3 + $0x8] sm:$0xff]
    %v208 = vld [vmem:[#allocation3 + $0x10] sm:$0xff]
    %v209 = vld [vmem:[#allocation3 + $0x18] sm:$0xff]
    %vm210 = vcmask 261120
    %v212 = vsel %vm210, %v204, 0
    %214 = vmatprep.subr.mxu0 0.0
    %215 = vmatpush1.msra.mxu0 %v206
    %216 = vmatprep.subr.mxu0 0.0
    %217 = vmatpush1.msra.mxu0 %v207
    %218 = vmatprep.subr.mxu0 0.0
    %219 = vmatpush1.msra.mxu0 %v208
    %220 = vmatprep.subr.mxu0 0.0
    %221 = vmatpush1.msra.mxu0 %v209
    %222 = vmatprep.subr.mxu0 0.0
    %223 = vmatpush1.msra.mxu0 0.0
    %224 = vmatprep.subr.mxu0 0.0
    %225 = vmatpush1.msra.mxu0 0.0
    %226 = vmatprep.subr.mxu0 0.0
    %227 = vmatpush1.msra.mxu0 0.0
    %228 = vmatprep.subr.mxu0 0.0
    %229 = vmatpush1.msra.mxu0 0.0
    %230 = vmatprep.subr.mxu0 0.0
    %231 = vmatpush1.msra.mxu0 0.0
    %232 = vmatprep.subr.mxu0 0.0
    %233 = vmatpush1.msra.mxu0 0.0
    %234 = vmatprep.subr.mxu0 0.0
    %235 = vmatpush1.msra.mxu0 0.0
    %236 = vmatprep.subr.mxu0 0.0
    %237 = vmatpush1.msra.mxu0 0.0
    %238 = vmatprep.subr.mxu0 0.0
    %239 = vmatpush1.msra.mxu0 0.0
    %240 = vmatprep.subr.mxu0 0.0
    %241 = vmatpush1.msra.mxu0 0.0
    %242 = vmatprep.subr.mxu0 0.0
    %243 = vmatpush1.msra.mxu0 0.0
    %244 = vmatprep.subr.mxu0 0.0
    %245 = vmatpush1.msra.mxu0 0.0
    %246 = vmatprep.subr.mxu0 0.0
    %247 = vmatpush1.msra.mxu0 0.0
    %248 = vmatprep.subr.mxu0 0.0
    %249 = vmatpush1.msra.mxu0 0.0
    %250 = vmatprep.subr.mxu0 0.0
    %251 = vmatpush1.msra.mxu0 0.0
    %252 = vmatprep.subr.mxu0 0.0
    %253 = vmatpush1.msra.mxu0 0.0
    %254 = vmatprep.subr.mxu0 0.0
    %255 = vmatpush1.msra.mxu0 0.0
    %256 = vmatprep.subr.mxu0 0.0
    %257 = vmatpush1.msra.mxu0 0.0
    %258 = vmatprep.subr.mxu0 0.0
    %259 = vmatpush1.msra.mxu0 0.0
    %260 = vmatprep.subr.mxu0 0.0
    %261 = vmatpush1.msra.mxu0 0.0
    %262 = vmatprep.subr.mxu0 0.0
    %263 = vmatpush1.msra.mxu0 0.0
    %264 = vmatprep.subr.mxu0 0.0
    %265 = vmatpush1.msra.mxu0 0.0
    %266 = vmatprep.subr.mxu0 0.0
    %267 = vmatpush1.msra.mxu0 0.0
    %268 = vmatprep.subr.mxu0 0.0
    %269 = vmatpush1.msra.mxu0 0.0
    %270 = vmatprep.subr.mxu0 0.0
    %271 = vmatpush1.msra.mxu0 0.0
    %272 = vmatprep.subr.mxu0 0.0
    %273 = vmatpush1.msra.mxu0 0.0
    %274 = vmatprep.subr.mxu0 0.0
    %275 = vmatpush1.msra.mxu0 0.0
    %276 = vmatprep.subr.mxu0 0.0
    %277 = vmatpush1.msra.mxu0 0.0
    %278 = vmatprep.mubr.f32.mxu0 0.0
    %279 = vmatmul.mubr.f32.gmra.mrb[0].mxu0 %v212
    %v280 = vpop.f32.mrb[0].mxu0
    %v281 = vadd.f32 0.0, %v280
    %v282 = vpop.f32.mrb[0].mxu0
    %283 = vdwg.mxu0
    %v284 = vadd.f32 %v205, %v281
    %vm285 = vcmask 254976
    %286 = vst.msk [vmem:[#allocation2] sm:$0x3] %vm285, %v284
    // Predicated region
    $region26: #{tpu_custom_call.1} parent=1 // pred_check
      %p287 = pneg %p28
    $region27: #{tpu_custom_call.1} parent=1 // pred_check_branch
      %289 = sbr.rel (%p287) target = $region29
    $region28: #{tpu_custom_call.1} parent=1 // pred_region
      %v290 = vld [vmem:[#allocation2] sm:$0x3]
      %v291 = vld [vmem:[%s5] sm:$0x3]
      %293 = vset.pattern.permute.xlu0 0
      %294 = vperm.xlu0 %293, %v291
      %v295 = vpop.permute.xlu0 %294
      %v297 = vmul.f32 %v290, %v295
      %v298 = vld [vmem:[%s3] sm:$0xff]
      %v299 = vld [vmem:[%s3 + $0x8] sm:$0xff]
      %v300 = vld [vmem:[%s3 + $0x10] sm:$0xff]
      %v301 = vld [vmem:[%s3 + $0x18] sm:$0xff]
      %v302 = vld [vmem:[%s4] sm:$0x1]
      %v304 = vlaneseq
      %v305 = vshrl.u32 %v304, 7
      %v306 = vsub.s32 0, %v305
      %v307 = vrot.slane %v302, %v306
      %v310 = vsel %vm210, %v297, 0
      %312 = vmatprep.subr.mxu0 0.0
      %313 = vmatpush1.msra.mxu0 %v298
      %314 = vmatprep.subr.mxu0 0.0
      %315 = vmatpush1.msra.mxu0 %v299
      %316 = vmatprep.subr.mxu0 0.0
      %317 = vmatpush1.msra.mxu0 %v300
      %318 = vmatprep.subr.mxu0 0.0
      %319 = vmatpush1.msra.mxu0 %v301
      %320 = vmatprep.subr.mxu0 0.0
      %321 = vmatpush1.msra.mxu0 0.0
      %322 = vmatprep.subr.mxu0 0.0
      %323 = vmatpush1.msra.mxu0 0.0
      %324 = vmatprep.subr.mxu0 0.0
      %325 = vmatpush1.msra.mxu0 0.0
      %326 = vmatprep.subr.mxu0 0.0
      %327 = vmatpush1.msra.mxu0 0.0
      %328 = vmatprep.subr.mxu0 0.0
      %329 = vmatpush1.msra.mxu0 0.0
      %330 = vmatprep.subr.mxu0 0.0
      %331 = vmatpush1.msra.mxu0 0.0
      %332 = vmatprep.subr.mxu0 0.0
      %333 = vmatpush1.msra.mxu0 0.0
      %334 = vmatprep.subr.mxu0 0.0
      %335 = vmatpush1.msra.mxu0 0.0
      %336 = vmatprep.subr.mxu0 0.0
      %337 = vmatpush1.msra.mxu0 0.0
      %338 = vmatprep.subr.mxu0 0.0
      %339 = vmatpush1.msra.mxu0 0.0
      %340 = vmatprep.subr.mxu0 0.0
      %341 = vmatpush1.msra.mxu0 0.0
      %342 = vmatprep.subr.mxu0 0.0
      %343 = vmatpush1.msra.mxu0 0.0
      %344 = vmatprep.subr.mxu0 0.0
      %345 = vmatpush1.msra.mxu0 0.0
      %346 = vmatprep.subr.mxu0 0.0
      %347 = vmatpush1.msra.mxu0 0.0
      %348 = vmatprep.subr.mxu0 0.0
      %349 = vmatpush1.msra.mxu0 0.0
      %350 = vmatprep.subr.mxu0 0.0
      %351 = vmatpush1.msra.mxu0 0.0
      %352 = vmatprep.subr.mxu0 0.0
      %353 = vmatpush1.msra.mxu0 0.0
      %354 = vmatprep.subr.mxu0 0.0
      %355 = vmatpush1.msra.mxu0 0.0
      %356 = vmatprep.subr.mxu0 0.0
      %357 = vmatpush1.msra.mxu0 0.0
      %358 = vmatprep.subr.mxu0 0.0
      %359 = vmatpush1.msra.mxu0 0.0
      %360 = vmatprep.subr.mxu0 0.0
      %361 = vmatpush1.msra.mxu0 0.0
      %362 = vmatprep.subr.mxu0 0.0
      %363 = vmatpush1.msra.mxu0 0.0
      %364 = vmatprep.subr.mxu0 0.0
      %365 = vmatpush1.msra.mxu0 0.0
      %366 = vmatprep.subr.mxu0 0.0
      %367 = vmatpush1.msra.mxu0 0.0
      %368 = vmatprep.subr.mxu0 0.0
      %369 = vmatpush1.msra.mxu0 0.0
      %370 = vmatprep.subr.mxu0 0.0
      %371 = vmatpush1.msra.mxu0 0.0
      %372 = vmatprep.subr.mxu0 0.0
      %373 = vmatpush1.msra.mxu0 0.0
      %374 = vmatprep.subr.mxu0 0.0
      %375 = vmatpush1.msra.mxu0 0.0
      %376 = vmatprep.mubr.f32.mxu0 0.0
      %377 = vmatmul.mubr.f32.gmra.mrb[0].mxu0 %v310
      %v378 = vpop.f32.mrb[0].mxu0
      %v379 = vadd.f32 %v307, %v378
      %v380 = vpop.f32.mrb[0].mxu0
      %381 = vdwg.mxu0
      %382 = vst [vmem:[#allocation6] sm:$0x3] %v379
    $region29: #{tpu_custom_call.1} parent=1 // pred_fallthru
      _
    // Predicated region
    $region30: #{tpu_custom_call.1} parent=1 // pred_check
      _
    $region31: #{tpu_custom_call.1} parent=1 // pred_check_branch
      %384 = sbr.rel (0) target = $region33
    $region32: #{tpu_custom_call.1} parent=1 // pred_region
      %s386 = ssub.s32 32, 32
      %387 = vsyncadd [#allocation7], %s386
      %s389 = sshll.u32 [#allocation6], 4
      %s390 = int_to_ptr.vmem [resolvable:$true] %s389
      %392 = dma.vmem_to_hbm [thread:$0]  %s390, 32, %s6, [#allocation7]
    $region33: #{tpu_custom_call.1} parent=1 // pred_fallthru
      _
    // Predicated region
    $region34: #{tpu_custom_call.1} parent=1 // pred_check
      _
    $region35: #{tpu_custom_call.1} parent=1 // pred_check_branch
      %394 = sbr.rel (0) target = $region37
    $region36: #{tpu_custom_call.1} parent=1 // pred_region
      %395 = dma.done [#allocation7], 32
    $region37: #{tpu_custom_call.1} parent=1 // pred_fallthru
      _
    %396 = vsyncpa [#allocation7], 1

</llo_original>
